<compile_context>
chip_gen: v5e
topology: v5e:2x2
jax: 0.10.0
libtpu: 0.0.40
codegen_flags: <defaults>
</compile_context>

<pallas_src>
import math

import jax
import jax.numpy as jnp
from jax.experimental import pallas as pl
from jax.experimental.pallas import tpu as pltpu

LANES = 128
SUBLANES = 8
_MIN_SPLIT_BYTES = 1 * 1024 * 1024       # only split for megacore if each half >= 1 MiB
_VMEM_LIMIT_BYTES = 32 * 1024 * 1024     # safe on v5e/v6e/v7x


def _scale_kernel(scale_ref, x_ref, o_ref):
    # One VPU multiply over the whole VMEM tile. scale_ref carries the compute
    # dtype (f32 for float outputs, i32 for integer outputs).
    s = scale_ref[0, 0]
    o_ref[...] = (x_ref[...].astype(s.dtype) * s).astype(o_ref.dtype)


def _even_grid(n_units, tile):
    """cdiv grid along the merged leading dim; if the step count is odd (>1),
    shrink the tile slightly so the 'parallel' axis balances across v7x's
    two TensorCores (harmless on 1-TC chips)."""
    steps = pl.cdiv(n_units, tile)
    if steps > 1 and steps % 2 == 1 and tile > 1:
        tile = max(1, pl.cdiv(n_units, steps + 1))
        steps = pl.cdiv(n_units, tile)
    return tile, steps


def scale_pallas(x, scale, *, target_block_bytes=4 * 1024 * 1024, out_dtype=None):
    """Elementwise x * scale via a Pallas TPU kernel (torch `Scale` semantics).

    out_dtype: optional override (e.g. jnp.bfloat16 for uint8 frames). Changes
    the output dtype vs. the torch module, so it is opt-in.
    """
    orig_shape = x.shape
    if out_dtype is None:
        out_dtype = jnp.result_type(x, scale)   # weak-scalar promotion, like torch
    out_dtype = jnp.dtype(out_dtype)

    # Compute dtype: integer outputs use int32 math, float outputs use f32 math.
    # TODO(synk): float64 inputs (jax_enable_x64) would run at f32 precision;
    # TPU Pallas has no f64 vector path.
    if jnp.issubdtype(out_dtype, jnp.integer):
        compute_dtype = jnp.int32
    else:
        compute_dtype = jnp.float32
    scale_arr = jnp.full((1, 1), scale, dtype=compute_dtype)

    itemsize = max(jnp.dtype(x.dtype).itemsize, out_dtype.itemsize)

    if x.ndim <= 1:
        # 1-D (or 0-D) path: block along the single (lane) dim.
        xv = x.reshape((1,)) if x.ndim == 0 else x
        n = xv.shape[0]
        tile_n = max(LANES, (target_block_bytes // itemsize) // LANES * LANES)
        if tile_n >= n:
            tile_n = n
            if n > LANES and n * itemsize >= 2 * _MIN_SPLIT_BYTES:
                # Big enough to split across v7x's two TensorCores.
                tile_n = pl.cdiv(pl.cdiv(n, 2), LANES) * LANES
        grid = (pl.cdiv(n, tile_n),)
        block = (tile_n,)
        index_map = lambda i: (i,)
        out_view_shape = (n,)
    else:
        # Merge only the *leading* dims (layout-preserving, no HBM copy); keep
        # the minor two dims as full block dims so no relayout is triggered.
        h, w = x.shape[-2], x.shape[-1]
        lead = math.prod(x.shape[:-2])
        xv = x.reshape(lead, h, w)
        plane_bytes = h * w * itemsize

        if plane_bytes <= target_block_bytes:
            tile_h = h
            tile_l = max(1, min(lead, target_block_bytes // plane_bytes))
            if (tile_l >= lead and lead > 1
                    and lead * plane_bytes >= 2 * _MIN_SPLIT_BYTES):
                # Give each of v7x's two TensorCores one half (size-gated so
                # small Atari batches keep a single grid step on 1-TC chips).
                tile_l = pl.cdiv(lead, 2)
            tile_l, grid_l = _even_grid(lead, tile_l)
        else:
            # A single (H, W) plane exceeds the target block: also tile the
            # second-minor dim (multiple of 8 sublanes, or the full dim).
            tile_l = 1
            grid_l = lead
            tile_h = max(
                SUBLANES,
                (target_block_bytes // (w * itemsize)) // SUBLANES * SUBLANES,
            )
            tile_h = min(tile_h, h)
        grid = (grid_l, pl.cdiv(h, tile_h))
        block = (tile_l, tile_h, w)
        index_map = lambda i, j: (i, j, 0)
        out_view_shape = (lead, h, w)

    out = pl.pallas_call(
        _scale_kernel,
        out_shape=jax.ShapeDtypeStruct(out_view_shape, out_dtype),
        grid_spec=pltpu.PrefetchScalarGridSpec(
            num_scalar_prefetch=0,
            grid=grid,
            in_specs=[
                pl.BlockSpec(memory_space=pltpu.MemorySpace.SMEM),  # runtime scale
                pl.BlockSpec(block, index_map),
            ],
            out_specs=pl.BlockSpec(block, index_map),
        ),
        compiler_params=pltpu.CompilerParams(
            dimension_semantics=("parallel",) * len(grid),
            vmem_limit_bytes=_VMEM_LIMIT_BYTES,
        ),
    )(scale_arr, xv)

    return out.reshape(orig_shape)


if __name__ == "__main__":
    key = jax.random.PRNGKey(0)
    k1, k2, k3, k4, k5, k6 = jax.random.split(key, 6)
    scale = 1.0 / 255.0  # the value cleanrl uses: Scale(1/255)

    # Case 1: NCHW float frame batch (single-block fast path).
    x = jax.random.uniform(k1, (2, 4, 16, 16), dtype=jnp.float32) * 255.0
    out = jax.block_until_ready(scale_pallas(x, scale))
    ref = x * scale
    assert out.shape == x.shape and out.dtype == ref.dtype
    assert jnp.allclose(out, ref, atol=1e-6, rtol=1e-6)

    # Case 2: awkward dims (no padding/slicing; full-dim minor blocks).
    x2 = jax.random.normal(k2, (3, 5, 7, 11), dtype=jnp.float32)
    out2 = jax.block_until_ready(scale_pallas(x2, 0.5))
    assert out2.shape == x2.shape
    assert jnp.allclose(out2, x2 * 0.5, atol=1e-6, rtol=1e-6)

    # Case 3: uint8 Atari-style frames promote to float32, like torch's x * float.
    x3 = jax.random.randint(k3, (2, 4, 16, 16), 0, 256, dtype=jnp.int32).astype(jnp.uint8)
    out3 = jax.block_until_ready(scale_pallas(x3, scale))
    ref3 = x3.astype(jnp.float32) * scale
    assert out3.dtype == jnp.float32
    assert jnp.allclose(out3, ref3, atol=1e-6, rtol=1e-6)

    # Case 3b: opt-in bfloat16 output (halves write traffic for uint8 frames).
    out3b = jax.block_until_ready(scale_pallas(x3, scale, out_dtype=jnp.bfloat16))
    assert out3b.dtype == jnp.bfloat16
    assert jnp.allclose(out3b.astype(jnp.float32), ref3, atol=1e-2, rtol=1e-2)

    # Case 4: multi-step grid with a partial last leading block (small target
    # block size used only to exercise the tiling path cheaply).
    x4 = jax.random.normal(k4, (16, 4, 24, 32), dtype=jnp.float32)
    out4 = jax.block_until_ready(scale_pallas(x4, scale, target_block_bytes=64 * 1024))
    assert jnp.allclose(out4, x4 * scale, atol=1e-6, rtol=1e-6)

    # Case 5: plane bigger than the block target -> second-minor (H) tiling path.
    x5 = jax.random.normal(k5, (2, 1, 100, 128), dtype=jnp.float32)
    out5 = jax.block_until_ready(scale_pallas(x5, 2.0, target_block_bytes=16 * 1024))
    assert jnp.allclose(out5, x5 * 2.0, atol=1e-6, rtol=1e-6)

    # Case 6: 1-D input path.
    x6 = jax.random.normal(k6, (1000,), dtype=jnp.float32)
    out6 = jax.block_until_ready(scale_pallas(x6, scale))
    assert jnp.allclose(out6, x6 * scale, atol=1e-6, rtol=1e-6)

    print("KERNEL_OK")
</pallas_src>

<mosaic_0001>
module attributes {stable_mosaic.version = 11 : i64} {
  func.func @_scale_kernel(%arg0: i32, %arg1: i32, %arg2: memref<1x1xf32, #tpu.memory_space<smem>>, %arg3: memref<8x16x16xf32, #tpu.memory_space<vmem>>, %arg4: memref<8x16x16xf32, #tpu.memory_space<vmem>>) attributes {dimension_semantics = [#tpu.dimension_semantics<parallel>, #tpu.dimension_semantics<parallel>], iteration_bounds = array<i64: 1, 1>, scalar_prefetch = 0 : i64, scratch_operands = 0 : i64, tpu.core_type = #tpu.core_type<tc>, window_params = [{transform_indices = @transform_0, window_bounds = array<i64: 1, 1>}, {transform_indices = @transform_1, window_bounds = array<i64: 8, 16, 16>}, {transform_indices = @transform_2, window_bounds = array<i64: 8, 16, 16>}]} {
    %c0 = arith.constant 0 : index
    %c0_0 = arith.constant 0 : index
    %0 = memref.load %arg2[%c0, %c0_0] : memref<1x1xf32, #tpu.memory_space<smem>>
    %c0_1 = arith.constant 0 : index
    %c0_2 = arith.constant 0 : index
    %c0_3 = arith.constant 0 : index
    %1 = vector.load %arg3[%c0_1, %c0_2, %c0_3] : memref<8x16x16xf32, #tpu.memory_space<vmem>>, vector<8x16x16xf32>
    %2 = vector.broadcast %0 : f32 to vector<8x16x16xf32>
    %3 = arith.mulf %1, %2 : vector<8x16x16xf32>
    %c0_4 = arith.constant 0 : index
    %c0_5 = arith.constant 0 : index
    %c0_6 = arith.constant 0 : index
    %4 = vector.load %arg4[%c0_4, %c0_5, %c0_6] : memref<8x16x16xf32, #tpu.memory_space<vmem>>, vector<8x16x16xf32>
    tpu.vector_store %arg4[%c0_4, %c0_5, %c0_6], %3 {strides = array<i32>} : memref<8x16x16xf32, #tpu.memory_space<vmem>>, vector<8x16x16xf32>,
    return
  }
  func.func @transform_0(%arg0: i32, %arg1: i32) -> (i32, i32) {
    %c0_i32 = arith.constant 0 : i32
    %c0_i32_0 = arith.constant 0 : i32
    %c0_i32_1 = arith.constant 0 : i32
    return %c0_i32, %c0_i32_0 : i32, i32
  }
  func.func @transform_1(%arg0: i32, %arg1: i32) -> (i32, i32, i32) {
    %c0_i32 = arith.constant 0 : i32
    %c0_i32_0 = arith.constant 0 : i32
    return %arg0, %arg1, %c0_i32 : i32, i32, i32
  }
  func.func @transform_2(%arg0: i32, %arg1: i32) -> (i32, i32, i32) {
    %c0_i32 = arith.constant 0 : i32
    %c0_i32_0 = arith.constant 0 : i32
    return %arg0, %arg1, %c0_i32 : i32, i32, i32
  }
}

</mosaic_0001>

<llo_original>
// kernel: tpu_custom_call.1
$region0: #{tpu_custom_call.1}
  #allocation0 [shape = 'u32[]', space=smem, size = 0x4, offset = 0x4, fixed_abs, tag = 'smem constant byte address 0x4 - core index']
  #allocation1 [shape = 'u32[72,128]{1,0:T(1,128)}', space=vmem, size = 0x9000, scoped, tag = 'internal scratch']
  #allocation2 [shape = 'f32[1,1]{1,0:T(1,128)S(6)}', space=smem, size = 0x200, scoped, tag = 'scoped memory for tpu_custom_call.1']
  %s0 = inlined_call_operand.<no memory space> [shape: f32[1,1], index: 0, kind: input, shape index: {}]
  %s1 = inlined_call_operand.hbm [shape: f32[8,16,16], index: 1, kind: input, shape index: {}]
  %s2 = inlined_call_operand.hbm [shape: f32[8,16,16], index: 2, kind: output, shape index: {}]
  %s3 = sld [smem:[#allocation0]]
  $region22: #{tpu_custom_call.1} parent=0
    _
  %s5 = ssub.s32 1, %s3
  %s6 = scalar_select 0, %s5, %s3
  %7 = sst [smem:[#allocation2]] %s0
  $region1: #{tpu_custom_call.1} parent=0
    #allocation3 [shape = 'u8[65536]{0}', space=vmem, size = 0x10000, scoped, tag = 'input window, operand 1, single buffered']
    #allocation4 [shape = 's32[1]{0}', space=sflag, size = 0x4, scoped, tag = 'scoped memory for tpu_custom_call.1']
    #allocation5 [shape = 's32[1]{0}', space=sflag, size = 0x4, scoped, tag = 'scoped memory for tpu_custom_call.1']
    #allocation6 [shape = 'u8[65536]{0}', space=vmem, size = 0x10000, scoped, tag = 'output window, operand 0, single buffered']
    %8 = vsyncpa [#allocation4], 0
    %9 = vsyncpa [#allocation5], 0
    // Predicated region
    $region2: #{tpu_custom_call.1} parent=1 // pred_check
      _
    $region3: #{tpu_custom_call.1} parent=1 // pred_check_branch
      %11 = sbr.rel (0) target = $region5
    $region4: #{tpu_custom_call.1} parent=1 // pred_region
      _
    $region5: #{tpu_custom_call.1} parent=1 // pred_fallthru
      _
    // Predicated region
    $region6: #{tpu_custom_call.1} parent=1 // pred_check
      _
    $region7: #{tpu_custom_call.1} parent=1 // pred_check_branch
      %13 = sbr.rel (0) target = $region9
    $region8: #{tpu_custom_call.1} parent=1 // pred_region
      %15 = vsyncadd [#allocation4], 0
      %s16 = sshll.u32 %s1, 4
      %s17 = int_to_ptr.hbm [resolvable:$true] %s16
      %s18 = sshll.u32 [#allocation3], 4
      %s19 = int_to_ptr.vmem [resolvable:$true] %s18
      %24 = dma.hbm_to_vmem [thread:$0]  %s17, 2048, %s19, [#allocation4], 128, 128, 8
    $region9: #{tpu_custom_call.1} parent=1 // pred_fallthru
      _
    // Predicated region
    $region10: #{tpu_custom_call.1} parent=1 // pred_check
      _
    $region11: #{tpu_custom_call.1} parent=1 // pred_check_branch
      %26 = sbr.rel (0) target = $region13
    $region12: #{tpu_custom_call.1} parent=1 // pred_region
      %28 = dma.done [#allocation4], 2048
    $region13: #{tpu_custom_call.1} parent=1 // pred_fallthru
      _
    %s29 = sld [smem:[#allocation2]]
    %v30 = vld [vmem:[#allocation3] sm:$0xff]
    %v31 = vld [vmem:[#allocation3 + $0x8] sm:$0xff]
    %v32 = vld [vmem:[#allocation3 + $0x10] sm:$0xff]
    %v33 = vld [vmem:[#allocation3 + $0x18] sm:$0xff]
    %v34 = vld [vmem:[#allocation3 + $0x20] sm:$0xff]
    %v35 = vld [vmem:[#allocation3 + $0x28] sm:$0xff]
    %v36 = vld [vmem:[#allocation3 + $0x30] sm:$0xff]
    %v37 = vld [vmem:[#allocation3 + $0x38] sm:$0xff]
    %v38 = vld [vmem:[#allocation3 + $0x40] sm:$0xff]
    %v39 = vld [vmem:[#allocation3 + $0x48] sm:$0xff]
    %v40 = vld [vmem:[#allocation3 + $0x50] sm:$0xff]
    %v41 = vld [vmem:[#allocation3 + $0x58] sm:$0xff]
    %v42 = vld [vmem:[#allocation3 + $0x60] sm:$0xff]
    %v43 = vld [vmem:[#allocation3 + $0x68] sm:$0xff]
    %v44 = vld [vmem:[#allocation3 + $0x70] sm:$0xff]
    %v45 = vld [vmem:[#allocation3 + $0x78] sm:$0xff]
    %v46 = vstv %s29
    %v47 = vmul.f32 %v30, %v46
    %v48 = vmul.f32 %v31, %v46
    %v49 = vmul.f32 %v32, %v46
    %v50 = vmul.f32 %v33, %v46
    %v51 = vmul.f32 %v34, %v46
    %v52 = vmul.f32 %v35, %v46
    %v53 = vmul.f32 %v36, %v46
    %v54 = vmul.f32 %v37, %v46
    %v55 = vmul.f32 %v38, %v46
    %v56 = vmul.f32 %v39, %v46
    %v57 = vmul.f32 %v40, %v46
    %v58 = vmul.f32 %v41, %v46
    %v59 = vmul.f32 %v42, %v46
    %v60 = vmul.f32 %v43, %v46
    %v61 = vmul.f32 %v44, %v46
    %v62 = vmul.f32 %v45, %v46
    %vm63 = vcmask 130048
    %64 = vst.msk [vmem:[#allocation6] sm:$0xff] %vm63, %v47
    %65 = vst.msk [vmem:[#allocation6 + $0x8] sm:$0xff] %vm63, %v48
    %66 = vst.msk [vmem:[#allocation6 + $0x10] sm:$0xff] %vm63, %v49
    %67 = vst.msk [vmem:[#allocation6 + $0x18] sm:$0xff] %vm63, %v50
    %68 = vst.msk [vmem:[#allocation6 + $0x20] sm:$0xff] %vm63, %v51
    %69 = vst.msk [vmem:[#allocation6 + $0x28] sm:$0xff] %vm63, %v52
    %70 = vst.msk [vmem:[#allocation6 + $0x30] sm:$0xff] %vm63, %v53
    %71 = vst.msk [vmem:[#allocation6 + $0x38] sm:$0xff] %vm63, %v54
    %72 = vst.msk [vmem:[#allocation6 + $0x40] sm:$0xff] %vm63, %v55
    %73 = vst.msk [vmem:[#allocation6 + $0x48] sm:$0xff] %vm63, %v56
    %74 = vst.msk [vmem:[#allocation6 + $0x50] sm:$0xff] %vm63, %v57
    %75 = vst.msk [vmem:[#allocation6 + $0x58] sm:$0xff] %vm63, %v58
    %76 = vst.msk [vmem:[#allocation6 + $0x60] sm:$0xff] %vm63, %v59
    %77 = vst.msk [vmem:[#allocation6 + $0x68] sm:$0xff] %vm63, %v60
    %78 = vst.msk [vmem:[#allocation6 + $0x70] sm:$0xff] %vm63, %v61
    %79 = vst.msk [vmem:[#allocation6 + $0x78] sm:$0xff] %vm63, %v62
    // Predicated region
    $region14: #{tpu_custom_call.1} parent=1 // pred_check
      _
    $region15: #{tpu_custom_call.1} parent=1 // pred_check_branch
      %81 = sbr.rel (0) target = $region17
    $region16: #{tpu_custom_call.1} parent=1 // pred_region
      %83 = vsyncadd [#allocation5], 0
      %s84 = sshll.u32 [#allocation6], 4
      %s85 = int_to_ptr.vmem [resolvable:$true] %s84
      %s86 = sshll.u32 %s2, 4
      %s87 = int_to_ptr.hbm [resolvable:$true] %s86
      %92 = dma.vmem_to_hbm [thread:$0]  %s85, 2048, %s87, [#allocation5], 128, 128, 8
    $region17: #{tpu_custom_call.1} parent=1 // pred_fallthru
      _
    // Predicated region
    $region18: #{tpu_custom_call.1} parent=1 // pred_check
      _
    $region19: #{tpu_custom_call.1} parent=1 // pred_check_branch
      %94 = sbr.rel (0) target = $region21
    $region20: #{tpu_custom_call.1} parent=1 // pred_region
      %96 = dma.done [#allocation5], 2048
    $region21: #{tpu_custom_call.1} parent=1 // pred_fallthru
      _
    %97 = vsyncpa [#allocation4], 1
    %98 = vsyncpa [#allocation5], 1

</llo_original>
